<compile_context>
chip_gen: v6e
topology: v6e:2x2x1
jax: 0.10.0
libtpu: 0.0.40
codegen_flags: <defaults>
</compile_context>

<pallas_src>
import functools

import jax
import jax.numpy as jnp
from jax.experimental import pallas as pl
from jax.experimental.pallas import tpu as pltpu


def _round_up(v, m):
    return ((v + m - 1) // m) * m


def _chip_defaults():
    """Generation-aware tile / VMEM defaults (dispatch on VMEM capacity)."""
    vmem_cap = 128 * 1024 * 1024
    try:
        vmem_cap = int(pltpu.get_tpu_info().vmem_capacity_bytes)
    except Exception:
        pass
    if vmem_cap <= 64 * 1024 * 1024:
        # v7x-class: 64 MiB VMEM / TC -> keep the scoped limit tight, big
        # tiles (grid-step overhead dominates at ~3.2 TB/s HBM), 2 TCs.
        return {"tm": 512, "tk": 1024, "vmem_limit": 36 * 1024 * 1024,
                "two_tc": True}
    # v5e / v6e: 128 MiB VMEM.  512/1024 tiles are 128-multiples (v5e MXU)
    # and large enough to reach ~85% of the HBM roofline.
    return {"tm": 512, "tk": 1024, "vmem_limit": 64 * 1024 * 1024,
            "two_tc": False}


def _gcn_kernel(*refs, has_weight, has_bias, x_resident, mask_k, n_valid, tk,
                compute_dtype):
    it = iter(refs)
    adj_ref = next(it)
    f_ref = next(it)
    w_ref = next(it) if has_weight else None
    b_ref = next(it) if has_bias else None
    o_ref = next(it)
    acc_ref = next(it)

    k = pl.program_id(1)

    @pl.when(k == 0)
    def _init():
        acc_ref[...] = jnp.zeros_like(acc_ref)

    a = adj_ref[...]
    if mask_k:
        # Last K tile is ragged: columns >= n_valid were read out of bounds
        # (unspecified data); zero them so they cannot pollute valid rows.
        limit = n_valid - k * tk
        col = jax.lax.broadcasted_iota(jnp.int32, a.shape, dimension=1)
        a = jnp.where(col < limit, a, jnp.zeros_like(a))
    a = a.astype(compute_dtype)              # in-kernel cast (hidden under DMA)

    if x_resident:
        start = pl.multiple_of(k * tk, tk)
        xk = f_ref[pl.ds(start, tk), :]       # slice the VMEM-resident features
    else:
        xk = f_ref[...]
    xk = xk.astype(compute_dtype)

    # adj_tile @ feat_slab on the MXU, f32 accumulation.
    acc_ref[...] += jnp.dot(a, xk, preferred_element_type=jnp.float32)

    @pl.when(k == pl.num_programs(1) - 1)
    def _epilogue():
        acc = acc_ref[...]
        if has_weight:
            # Small per-row-tile GEMM, fully in f32 (no accumulator downcast);
            # runs once per row tile, hidden under the adj HBM stream.
            out = jnp.dot(acc, w_ref[...], preferred_element_type=jnp.float32)
        else:
            out = acc
        if has_bias:
            out = out + b_ref[...]
        o_ref[...] = out.astype(o_ref.dtype)


def graph_convolution(x, adj, weight, bias=None, *, tm=None, tk=None,
                      compute_dtype=jnp.bfloat16, vmem_limit_bytes=None,
                      x_resident_bytes=8 * 1024 * 1024):
    """Pallas GCN layer: adj @ (x @ weight) + bias."""
    N, in_f = x.shape
    in_f_w, out_f = weight.shape
    assert in_f_w == in_f
    assert adj.shape == (N, N)

    defaults = _chip_defaults()
    tm = defaults["tm"] if tm is None else tm
    tk = defaults["tk"] if tk is None else tk
    if vmem_limit_bytes is None:
        vmem_limit_bytes = defaults["vmem_limit"]

    # --- GEMM order: accumulate over the narrower feature width. ---
    pre_apply_weight = out_f < in_f
    if pre_apply_weight:
        feat = x.astype(jnp.float32) @ weight.astype(jnp.float32)   # tiny XLA GEMM
        f_dim = out_f
    else:
        feat = x.astype(jnp.float32)
        f_dim = in_f
    has_weight = not pre_apply_weight
    has_bias = bias is not None

    f_pad = _round_up(f_dim, 128)        # lane-dense accumulator / feat width
    out_f_pad = _round_up(out_f, 128)    # lane-dense output width

    # --- Tile selection (sublane: multiple of 16, lane: multiple of 128). ---
    tm = max(16, _round_up(tm, 16))
    tk = max(128, _round_up(tk, 128))
    tm_eff = N if N <= tm else tm
    tk_eff = N if N <= tk else tk

    # v7x has 2 TensorCores: keep >= 2 row tiles so the parallel axis feeds both.
    if defaults["two_tc"] and N >= 32 and pl.cdiv(N, tm_eff) < 2:
        tm_eff = _round_up(pl.cdiv(N, 2), 16)

    def vmem_need(tm_e, tk_e, np_c_e, x_res):
        need = 2 * tm_e * tk_e * 4                            # adj tiles (f32, x2)
        need += (np_c_e if x_res else 2 * tk_e) * f_pad * 4   # features
        if has_weight:
            need += f_pad * out_f_pad * 4                     # weight (x1)
        if has_bias:
            need += 8 * out_f_pad * 4                         # bias tile
        need += 2 * tm_e * out_f_pad * 4                      # output tiles (x2)
        need += tm_e * f_pad * 4                              # f32 accumulator
        return need

    budget = int(vmem_limit_bytes * 0.9)
    while True:
        grid_k = pl.cdiv(N, tk_eff)
        np_c = grid_k * tk_eff
        x_resident = np_c * f_pad * 4 <= x_resident_bytes
        if vmem_need(tm_eff, tk_eff, np_c, x_resident) <= budget:
            break
        if tk_eff > 128 and tk_eff % 128 == 0:
            tk_eff = max(128, (tk_eff // 2) // 128 * 128)
        elif tm_eff > 16 and tm_eff % 16 == 0:
            tm_eff = max(16, (tm_eff // 2) // 16 * 16)
        else:
            break

    grid_m = pl.cdiv(N, tm_eff)
    grid_k = pl.cdiv(N, tk_eff)
    np_c = grid_k * tk_eff
    x_resident = np_c * f_pad * 4 <= x_resident_bytes
    mask_k = np_c != N

    # adj goes in untouched (no pad, no dtype copy).  Only the small feature
    # matrix / weight / bias get padded (negligible vs. the adj stream).
    feat_p = feat
    if np_c != N or f_pad != f_dim:
        feat_p = jnp.pad(feat, ((0, np_c - N), (0, f_pad - f_dim)))

    inputs = [adj, feat_p]
    in_specs = [
        pl.BlockSpec((tm_eff, tk_eff), lambda i, k: (i, k)),          # adj tile
    ]
    if x_resident:
        in_specs.append(pl.BlockSpec((np_c, f_pad), lambda i, k: (0, 0),
                                     pipeline_mode=pl.Buffered(1)))   # resident X
    else:
        in_specs.append(pl.BlockSpec((tk_eff, f_pad), lambda i, k: (k, 0)))

    if has_weight:
        w_p = weight.astype(jnp.float32)
        if f_pad != in_f or out_f_pad != out_f:
            w_p = jnp.pad(w_p, ((0, f_pad - in_f), (0, out_f_pad - out_f)))
        inputs.append(w_p)
        in_specs.append(pl.BlockSpec((f_pad, out_f_pad), lambda i, k: (0, 0),
                                     pipeline_mode=pl.Buffered(1)))
    if has_bias:
        b_p = jnp.pad(bias.astype(jnp.float32), (0, out_f_pad - out_f))
        inputs.append(b_p.reshape(1, out_f_pad))
        in_specs.append(pl.BlockSpec((1, out_f_pad), lambda i, k: (0, 0),
                                     pipeline_mode=pl.Buffered(1)))

    kernel = functools.partial(
        _gcn_kernel, has_weight=has_weight, has_bias=has_bias,
        x_resident=x_resident, mask_k=mask_k, n_valid=N, tk=tk_eff,
        compute_dtype=compute_dtype)

    out_p = pl.pallas_call(
        kernel,
        out_shape=jax.ShapeDtypeStruct((N, out_f_pad), jnp.float32),
        grid_spec=pltpu.PrefetchScalarGridSpec(
            num_scalar_prefetch=0,
            grid=(grid_m, grid_k),
            in_specs=in_specs,
            out_specs=pl.BlockSpec((tm_eff, out_f_pad), lambda i, k: (i, 0)),
            scratch_shapes=[pltpu.VMEM((tm_eff, f_pad), jnp.float32)],
        ),
        compiler_params=pltpu.CompilerParams(
            dimension_semantics=("parallel", "arbitrary"),
            vmem_limit_bytes=vmem_limit_bytes,
        ),
    )(*inputs)

    if out_f_pad != out_f:
        out_p = out_p[:, :out_f]
    return out_p


def reference(x, adj, weight, bias=None):
    support = x @ weight
    out = adj @ support
    if bias is not None:
        out = out + bias[None, :]
    return out


def _make_inputs(key, N, in_f, out_f, with_bias=True):
    k_x, k_adj, k_w, k_b = jax.random.split(key, 4)
    x = jax.random.normal(k_x, (N, in_f), dtype=jnp.float32)
    # Symmetric row-normalized "adjacency" (dense stand-in for torch.spmm input)
    a_raw = (jax.random.uniform(k_adj, (N, N)) > 0.8).astype(jnp.float32)
    a_sym = jnp.maximum(a_raw, a_raw.T) + jnp.eye(N, dtype=jnp.float32)
    adj = a_sym / jnp.sum(a_sym, axis=1, keepdims=True)
    # PyTorch reset_parameters(): U(-stdv, stdv), stdv = 1/sqrt(out_features)
    stdv = 1.0 / (out_f ** 0.5)
    w = jax.random.uniform(k_w, (in_f, out_f), minval=-stdv, maxval=stdv,
                           dtype=jnp.float32)
    b = (jax.random.uniform(k_b, (out_f,), minval=-stdv, maxval=stdv,
                            dtype=jnp.float32) if with_bias else None)
    return x, adj, w, b


def _check(name, out, ref, atol=2e-2, rtol=2e-2):
    assert out.shape == ref.shape, f"{name}: shape {out.shape} vs {ref.shape}"
    err = jnp.max(jnp.abs(out - ref))
    assert jnp.allclose(out, ref, atol=atol, rtol=rtol), (
        f"{name}: mismatch vs reference (max abs err {err})")


if __name__ == "__main__":
    # 1) multi-tile grid (2x2), epilogue-weight path (in_f <= out_f), bias
    x, adj, w, b = _make_inputs(jax.random.PRNGKey(0), 256, 32, 128)
    out = jax.block_until_ready(graph_convolution(x, adj, w, b, tm=128, tk=128))
    _check("case1", out, reference(x, adj, w, b))

    # 2) same shapes, bias=None path (no bias tile DMA / add inside the kernel)
    out = jax.block_until_ready(graph_convolution(x, adj, w, None, tm=128, tk=128))
    _check("case2", out, reference(x, adj, w, None))

    # 3) f32 compute path (exact) on the same inputs
    out = jax.block_until_ready(graph_convolution(x, adj, w, b, tm=128, tk=128,
                                                  compute_dtype=jnp.float32))
    _check("case3_f32", out, reference(x, adj, w, b), atol=1e-4, rtol=1e-4)

    # 4) ragged N (in-kernel K masking + ragged row tiles), small tiles
    x, adj, w, b = _make_inputs(jax.random.PRNGKey(1), 200, 48, 64)
    out = jax.block_until_ready(graph_convolution(x, adj, w, b, tm=128, tk=128))
    _check("case4", out, reference(x, adj, w, b))

    # 5) out_f < in_f -> pre-applied weight path (kernel is adj @ (x @ W) + b)
    x, adj, w, b = _make_inputs(jax.random.PRNGKey(2), 192, 96, 32)
    out = jax.block_until_ready(graph_convolution(x, adj, w, b, tm=64, tk=64))
    _check("case5", out, reference(x, adj, w, b))

    # 6) generation-default tiles (single grid step at these small shapes)
    x, adj, w, b = _make_inputs(jax.random.PRNGKey(3), 256, 32, 128)
    out = jax.block_until_ready(graph_convolution(x, adj, w, b))
    _check("case6", out, reference(x, adj, w, b))

    print("KERNEL_OK")
</pallas_src>

<mosaic_0001>
module attributes {stable_mosaic.version = 11 : i64} {
  func.func @_gcn_kernel(%arg0: i32, %arg1: i32, %arg2: memref<128x128xf32, #tpu.memory_space<vmem>>, %arg3: memref<256x128xf32, #tpu.memory_space<vmem>>, %arg4: memref<128x128xf32, #tpu.memory_space<vmem>>, %arg5: memref<1x128xf32, #tpu.memory_space<vmem>>, %arg6: memref<128x128xf32, #tpu.memory_space<vmem>>, %arg7: memref<128x128xf32, #tpu.memory_space<vmem>>) attributes {dimension_semantics = [#tpu.dimension_semantics<parallel>, #tpu.dimension_semantics<arbitrary>], iteration_bounds = array<i64: 2, 2>, scalar_prefetch = 0 : i64, scratch_operands = 1 : i64, tpu.core_type = #tpu.core_type<tc>, window_params = [{transform_indices = @transform_0, window_bounds = array<i64: 128, 128>}, {pipeline_mode = #tpu.pipeline_mode<synchronous>, transform_indices = @transform_1, window_bounds = array<i64: 256, 128>}, {pipeline_mode = #tpu.pipeline_mode<synchronous>, transform_indices = @transform_2, window_bounds = array<i64: 128, 128>}, {pipeline_mode = #tpu.pipeline_mode<synchronous>, transform_indices = @transform_3, window_bounds = array<i64: 1, 128>}, {transform_indices = @transform_4, window_bounds = array<i64: 128, 128>}]} {
    %c0_i32 = arith.constant 0 : i32
    %0 = arith.cmpi eq, %arg1, %c0_i32 : i32
    %1 = arith.extui %0 : i1 to i32
    %c0_i32_0 = arith.constant 0 : i32
    %2 = arith.cmpi ne, %1, %c0_i32_0 : i32
    scf.if %2 {
      %cst_8 = arith.constant 0.000000e+00 : f32
      %17 = vector.broadcast %cst_8 : f32 to vector<128x128xf32>
      %c0_9 = arith.constant 0 : index
      %c0_10 = arith.constant 0 : index
      %18 = vector.load %arg7[%c0_9, %c0_10] : memref<128x128xf32, #tpu.memory_space<vmem>>, vector<128x128xf32>
      tpu.vector_store %arg7[%c0_9, %c0_10], %17 {strides = array<i32>} : memref<128x128xf32, #tpu.memory_space<vmem>>, vector<128x128xf32>,
    } else {
    }
    %c0 = arith.constant 0 : index
    %c0_1 = arith.constant 0 : index
    %3 = vector.load %arg2[%c0, %c0_1] : memref<128x128xf32, #tpu.memory_space<vmem>>, vector<128x128xf32>
    %4 = arith.truncf %3 : vector<128x128xf32> to vector<128x128xbf16>
    %c128_i32 = arith.constant 128 : i32
    %5 = arith.muli %arg1, %c128_i32 : i32
    %6 = tpu.assume_multiple %5, 128 : i32
    %7 = arith.index_cast %6 : i32 to index
    %c0_2 = arith.constant 0 : index
    %8 = vector.load %arg3[%7, %c0_2] : memref<256x128xf32, #tpu.memory_space<vmem>>, vector<128x128xf32>
    %9 = arith.truncf %8 : vector<128x128xf32> to vector<128x128xbf16>
    %c0_3 = arith.constant 0 : index
    %c0_4 = arith.constant 0 : index
    %10 = vector.load %arg7[%c0_3, %c0_4] : memref<128x128xf32, #tpu.memory_space<vmem>>, vector<128x128xf32>
    %cst = arith.constant dense<0.000000e+00> : vector<128x128xf32>
    %11 = tpu.matmul %4, %9, %cst {dimension_numbers = #tpu.dot_dimension_numbers<[1], [0], [0], [1], [0, 0, 1, 1], [], []>} : vector<128x128xbf16>, vector<128x128xbf16>, vector<128x128xf32> -> vector<128x128xf32>
    %12 = arith.addf %10, %11 : vector<128x128xf32>
    %c0_5 = arith.constant 0 : index
    %c0_6 = arith.constant 0 : index
    %13 = vector.load %arg7[%c0_5, %c0_6] : memref<128x128xf32, #tpu.memory_space<vmem>>, vector<128x128xf32>
    tpu.vector_store %arg7[%c0_5, %c0_6], %12 {strides = array<i32>} : memref<128x128xf32, #tpu.memory_space<vmem>>, vector<128x128xf32>,
    %c1_i32 = arith.constant 1 : i32
    %14 = arith.cmpi eq, %arg1, %c1_i32 : i32
    %15 = arith.extui %14 : i1 to i32
    %c0_i32_7 = arith.constant 0 : i32
    %16 = arith.cmpi ne, %15, %c0_i32_7 : i32
    scf.if %16 {
      %c0_8 = arith.constant 0 : index
      %c0_9 = arith.constant 0 : index
      %17 = vector.load %arg7[%c0_8, %c0_9] : memref<128x128xf32, #tpu.memory_space<vmem>>, vector<128x128xf32>
      %c0_10 = arith.constant 0 : index
      %c0_11 = arith.constant 0 : index
      %18 = vector.load %arg4[%c0_10, %c0_11] : memref<128x128xf32, #tpu.memory_space<vmem>>, vector<128x128xf32>
      %cst_12 = arith.constant dense<0.000000e+00> : vector<128x128xf32>
      %19 = tpu.matmul %17, %18, %cst_12 {dimension_numbers = #tpu.dot_dimension_numbers<[1], [0], [0], [1], [0, 0, 1, 1], [], []>} : vector<128x128xf32>, vector<128x128xf32>, vector<128x128xf32> -> vector<128x128xf32>
      %c0_13 = arith.constant 0 : index
      %c0_14 = arith.constant 0 : index
      %20 = vector.load %arg5[%c0_13, %c0_14] : memref<1x128xf32, #tpu.memory_space<vmem>>, vector<1x128xf32>
      %21 = vector.broadcast %20 : vector<1x128xf32> to vector<128x128xf32>
      %22 = arith.addf %19, %21 : vector<128x128xf32>
      %c0_15 = arith.constant 0 : index
      %c0_16 = arith.constant 0 : index
      %23 = vector.load %arg6[%c0_15, %c0_16] : memref<128x128xf32, #tpu.memory_space<vmem>>, vector<128x128xf32>
      tpu.vector_store %arg6[%c0_15, %c0_16], %22 {strides = array<i32>} : memref<128x128xf32, #tpu.memory_space<vmem>>, vector<128x128xf32>,
    } else {
    }
    return
  }
  func.func @transform_0(%arg0: i32, %arg1: i32) -> (i32, i32) {
    %c0_i32 = arith.constant 0 : i32
    return %arg0, %arg1 : i32, i32
  }
  func.func @transform_1(%arg0: i32, %arg1: i32) -> (i32, i32) {
    %c0_i32 = arith.constant 0 : i32
    %c0_i32_0 = arith.constant 0 : i32
    %c0_i32_1 = arith.constant 0 : i32
    return %c0_i32, %c0_i32_0 : i32, i32
  }
  func.func @transform_2(%arg0: i32, %arg1: i32) -> (i32, i32) {
    %c0_i32 = arith.constant 0 : i32
    %c0_i32_0 = arith.constant 0 : i32
    %c0_i32_1 = arith.constant 0 : i32
    return %c0_i32, %c0_i32_0 : i32, i32
  }
  func.func @transform_3(%arg0: i32, %arg1: i32) -> (i32, i32) {
    %c0_i32 = arith.constant 0 : i32
    %c0_i32_0 = arith.constant 0 : i32
    %c0_i32_1 = arith.constant 0 : i32
    return %c0_i32, %c0_i32_0 : i32, i32
  }
  func.func @transform_4(%arg0: i32, %arg1: i32) -> (i32, i32) {
    %c0_i32 = arith.constant 0 : i32
    %c0_i32_0 = arith.constant 0 : i32
    return %arg0, %c0_i32 : i32, i32
  }
}

</mosaic_0001>

<llo_original>
// kernel: tpu_custom_call.1
$region0: #{tpu_custom_call.1}
  #allocation0 [shape = 'u32[]', space=smem, size = 0x4, offset = 0x4, fixed_abs, tag = 'smem constant byte address 0x4 - core index']
  #allocation1 [shape = 'u32[144,128]{1,0:T(1,128)}', space=vmem, size = 0x12000, scoped, tag = 'internal scratch']
  #allocation2 [shape = 'f32[128,128]{1,0:T(8,128)}', space=vmem, size = 0x10000, scoped, tag = 'scratch operand']
  %s0 = inlined_call_operand.hbm [shape: f32[256,256], index: 0, kind: input, shape index: {}]
  %s1 = inlined_call_operand.hbm [shape: f32[256,128], index: 1, kind: input, shape index: {}]
  %s2 = inlined_call_operand.hbm [shape: f32[128,128], index: 2, kind: input, shape index: {}]
  %s3 = inlined_call_operand.vmem [shape: f32[1,128], index: 3, kind: input, shape index: {}]
  %s4 = inlined_call_operand.hbm [shape: f32[256,128], index: 4, kind: output, shape index: {}]
  %s5 = sld [smem:[#allocation0]]
  $region69: #{tpu_custom_call.1} parent=0
    _
  %s7 = ssub.s32 1, %s5
  %s8 = scalar_select 0, %s7, %s5
  $region1: #{tpu_custom_call.1} parent=0
    #allocation3 [shape = 'u8[131072]{0}', space=vmem, size = 0x20000, scoped, tag = 'input window, operand 0']
    #allocation4 [shape = 's32[2]{0}', space=sflag, size = 0x8, scoped, tag = 'scoped memory for tpu_custom_call.1']
    #allocation5 [shape = 's32[2]{0}', space=sflag, size = 0x8, scoped, tag = 'scoped memory for tpu_custom_call.1']
    #allocation6 [shape = 'u8[131072]{0}', space=vmem, size = 0x20000, scoped, tag = 'input window, operand 1, single buffered']
    #allocation7 [shape = 's32[1]{0}', space=sflag, size = 0x4, scoped, tag = 'scoped memory for tpu_custom_call.1']
    #allocation8 [shape = 'u8[65536]{0}', space=vmem, size = 0x10000, scoped, tag = 'input window, operand 2, single buffered']
    #allocation9 [shape = 'u8[131072]{0}', space=vmem, size = 0x20000, scoped, tag = 'output window, operand 0']
    %9 = vsyncpa [#allocation4], 0
    %s10 = scalar_lea.sflag [#allocation4], 1
    %11 = vsyncpa %s10, 0
    %12 = vsyncpa [#allocation7], 0
    %13 = vsyncpa [#allocation5], 0
    %s14 = scalar_lea.sflag [#allocation5], 1
    %15 = vsyncpa %s14, 0
    loop: start=0, step=1, limit=6
    $region2: #{tpu_custom_call.1} parent=1 // loop_pre_header
      _
    $region3: #{tpu_custom_call.1} parent=1 // loop_header
      %s17 = sphi 0, %s21
      %p18 = scmp.ge.s32.totalorder %s17, 6
      %s24 = sphi 0, %s36
      %s25 = sphi 0, %s32
      %s26 = sphi 0, %s24
      %s27 = sphi 0, %s25
      %s28 = sphi 0, %s26
      %s29 = sphi 0, %s27
      %s41 = sphi 0, %s43
      %s44 = sphi 0, %s41
      %s45 = sphi 0, %s44
      %s61 = sphi 0, %s45
      %s65 = sphi 0, %s65
      %s67 = sphi 0, %s65
      %s68 = sphi 0, %s67
      %s82 = sphi 0, %s68
      %s86 = sphi 0, %s86
      %s88 = sphi 0, %s86
      %s89 = sphi 0, %s88
      %s103 = sphi 0, %s89
      %s107 = sphi 0, %s107
      %s109 = sphi 0, %s107
      %s110 = sphi 0, %s109
      %s124 = sphi 0, %s110
      %s130 = sphi 0, %s132
      %s133 = sphi 0, %s130
      %s134 = sphi 0, %s133
      %s150 = sphi 0, %s134
    $region4: #{tpu_custom_call.1} parent=1 // loop_header_branch
      %20 = sbr.rel (%p18) target = $region8
    $region5: #{tpu_custom_call.1} parent=1 // loop_body
      %s22 = ssub.s32 %s17, 1
      %s23 = ssub.s32 %s17, 2
      %s30 = sadd.s32 1, %s25
      %p31 = scmp.ge.s32.totalorder %s30, 2
      %s32 = scalar_select %p31, 0, %s30
      %s33 = sadd.s32 1, %s24
      %s34 = scalar_select %p31, %s33, %s24
      %p35 = scmp.ge.s32.totalorder %s34, 2
      %s36 = scalar_select %p35, 0, %s34
      %s37 = ssub.s32 %s24, %s36
      %s38 = ssub.s32 %s25, %s32
      %s39 = sor.u32 %s37, %s38
      %p40 = scmp.eq.s32.totalorder %s39, 0
      %s42 = sadd.s32 %s41, 1
      %s43 = scalar_select %p40, %s41, %s42
      %p46 = pneg %p40
      %p47 = scmp.eq.s32.totalorder %s17, 3
      %p48 = por %p46, %p47
      %p49 = scmp.ne.s32.totalorder %s41, %s44
      %p50 = scmp.eq.s32.totalorder %s17, 0
      %p51 = por %p49, %p50
      %p52 = scmp.ne.s32.totalorder %s41, %s44
      %p53 = scmp.eq.s32.totalorder %s22, 3
      %p54 = por %p52, %p53
      %p55 = scmp.ne.s32.totalorder %s44, %s45
      %p56 = scmp.eq.s32.totalorder %s22, 0
      %p57 = por %p55, %p56
      %p58 = scmp.ne.s32.totalorder %s44, %s45
      %p59 = scmp.eq.s32.totalorder %s23, 3
      %p60 = por %p58, %p59
      %p62 = scmp.ne.s32.totalorder %s45, %s61
      %p63 = scmp.eq.s32.totalorder %s23, 0
      %p64 = por %p62, %p63
      %s66 = sadd.s32 %s65, 1
      %p69 = scmp.eq.s32.totalorder %s17, 3
      %p70 = scmp.ne.s32.totalorder %s65, %s67
      %p71 = scmp.eq.s32.totalorder %s17, 0
      %p72 = por %p70, %p71
      %p73 = scmp.ne.s32.totalorder %s65, %s67
      %p74 = scmp.eq.s32.totalorder %s22, 3
      %p75 = por %p73, %p74
      %p76 = scmp.ne.s32.totalorder %s67, %s68
      %p77 = scmp.eq.s32.totalorder %s22, 0
      %p78 = por %p76, %p77
      %p79 = scmp.ne.s32.totalorder %s67, %s68
      %p80 = scmp.eq.s32.totalorder %s23, 3
      %p81 = por %p79, %p80
      %p83 = scmp.ne.s32.totalorder %s68, %s82
      %p84 = scmp.eq.s32.totalorder %s23, 0
      %p85 = por %p83, %p84
      %s87 = sadd.s32 %s86, 1
      %p90 = scmp.eq.s32.totalorder %s17, 3
      %p91 = scmp.ne.s32.totalorder %s86, %s88
      %p92 = scmp.eq.s32.totalorder %s17, 0
      %p93 = por %p91, %p92
      %p94 = scmp.ne.s32.totalorder %s86, %s88
      %p95 = scmp.eq.s32.totalorder %s22, 3
      %p96 = por %p94, %p95
      %p97 = scmp.ne.s32.totalorder %s88, %s89
      %p98 = scmp.eq.s32.totalorder %s22, 0
      %p99 = por %p97, %p98
      %p100 = scmp.ne.s32.totalorder %s88, %s89
      %p101 = scmp.eq.s32.totalorder %s23, 3
      %p102 = por %p100, %p101
      %p104 = scmp.ne.s32.totalorder %s89, %s103
      %p105 = scmp.eq.s32.totalorder %s23, 0
      %p106 = por %p104, %p105
      %s108 = sadd.s32 %s107, 1
      %p111 = scmp.eq.s32.totalorder %s17, 3
      %p112 = scmp.ne.s32.totalorder %s107, %s109
      %p113 = scmp.eq.s32.totalorder %s17, 0
      %p114 = por %p112, %p113
      %p115 = scmp.ne.s32.totalorder %s107, %s109
      %p116 = scmp.eq.s32.totalorder %s22, 3
      %p117 = por %p115, %p116
      %p118 = scmp.ne.s32.totalorder %s109, %s110
      %p119 = scmp.eq.s32.totalorder %s22, 0
      %p120 = por %p118, %p119
      %p121 = scmp.ne.s32.totalorder %s109, %s110
      %p122 = scmp.eq.s32.totalorder %s23, 3
      %p123 = por %p121, %p122
      %p125 = scmp.ne.s32.totalorder %s110, %s124
      %p126 = scmp.eq.s32.totalorder %s23, 0
      %p127 = por %p125, %p126
      %s128 = ssub.s32 %s24, %s36
      %p129 = scmp.eq.s32.totalorder %s128, 0
      %s131 = sadd.s32 %s130, 1
      %s132 = scalar_select %p129, %s130, %s131
      %p135 = pneg %p129
      %p136 = scmp.eq.s32.totalorder %s17, 3
      %p137 = por %p135, %p136
      %p138 = scmp.ne.s32.totalorder %s130, %s133
      %p139 = scmp.eq.s32.totalorder %s17, 0
      %p140 = por %p138, %p139
      %p141 = scmp.ne.s32.totalorder %s130, %s133
      %p142 = scmp.eq.s32.totalorder %s22, 3
      %p143 = por %p141, %p142
      %p144 = scmp.ne.s32.totalorder %s133, %s134
      %p145 = scmp.eq.s32.totalorder %s22, 0
      %p146 = por %p144, %p145
      %p147 = scmp.ne.s32.totalorder %s133, %s134
      %p148 = scmp.eq.s32.totalorder %s23, 3
      %p149 = por %p147, %p148
      %p151 = scmp.ne.s32.totalorder %s134, %s150
      %p152 = scmp.eq.s32.totalorder %s23, 0
      %p153 = por %p151, %p152
      %p154 = scmp.le.s32.totalorder 1, %s17
      %p155 = scmp.lt.s32.totalorder %s17, 5
      %p156 = pnand %p154, %p155
      %p157 = pneg %p156
      // Predicated region
      $region9: #{tpu_custom_call.1} parent=5 // pred_check
        _
      $region10: #{tpu_custom_call.1} parent=5 // pred_check_branch
        %159 = sbr.rel (%p156) target = $region12
      $region11: #{tpu_custom_call.1} parent=5 // pred_region
        %s160 = ssub.s32 %s17, 1
        // Predicated region
        $region13: #{tpu_custom_call.1} parent=11 // pred_check
          %p161 = pneg %p78
        $region14: #{tpu_custom_call.1} parent=11 // pred_check_branch
          %163 = sbr.rel (%p161) target = $region16
        $region15: #{tpu_custom_call.1} parent=11 // pred_region
          %s165 = ssub.s32 4096, 4096
          %166 = vsyncadd [#allocation7], %s165
          %s167 = sshll.u32 [#allocation6], 4
          %s168 = int_to_ptr.vmem [resolvable:$true] %s167
          %173 = dma.hbm_to_vmem [thread:$0]  %s1, 4096, %s168, [#allocation7], 128, 128, 8
        $region16: #{tpu_custom_call.1} parent=11 // pred_fallthru
          _
        // Predicated region
        $region17: #{tpu_custom_call.1} parent=11 // pred_check
          %p174 = pneg %p99
        $region18: #{tpu_custom_call.1} parent=11 // pred_check_branch
          %176 = sbr.rel (%p174) target = $region20
        $region19: #{tpu_custom_call.1} parent=11 // pred_region
          %s178 = ssub.s32 2048, 2048
          %179 = vsyncadd [#allocation7], %s178
          %s180 = sshll.u32 [#allocation8], 4
          %s181 = int_to_ptr.vmem [resolvable:$true] %s180
          %186 = dma.hbm_to_vmem [thread:$0]  %s2, 2048, %s181, [#allocation7], 128, 128, 8
        $region20: #{tpu_custom_call.1} parent=11 // pred_fallthru
          _
        // Predicated region
        $region21: #{tpu_custom_call.1} parent=11 // pred_check
          %p187 = pneg %p120
        $region22: #{tpu_custom_call.1} parent=11 // pred_check_branch
          %189 = sbr.rel (%p187) target = $region24
        $region23: #{tpu_custom_call.1} parent=11 // pred_region
          _
        $region24: #{tpu_custom_call.1} parent=11 // pred_fallthru
          _
      $region12: #{tpu_custom_call.1} parent=5 // pred_fallthru
        _
      %p190 = scmp.lt.s32.totalorder %s17, 4
      // Predicated region
      $region25: #{tpu_custom_call.1} parent=5 // pred_check
        %p191 = pneg %p190
      $region26: #{tpu_custom_call.1} parent=5 // pred_check_branch
        %193 = sbr.rel (%p191) target = $region28
      $region27: #{tpu_custom_call.1} parent=5 // pred_region
        // Predicated region
        $region29: #{tpu_custom_call.1} parent=27 // pred_check
          %p194 = pneg %p51
        $region30: #{tpu_custom_call.1} parent=27 // pred_check_branch
          %196 = sbr.rel (%p194) target = $region32
        $region31: #{tpu_custom_call.1} parent=27 // pred_region
          %s197 = sand.u32 %s41, 1
          %s198 = scalar_lea.sflag [#allocation4], %s197
          %s199 = sand.u32 %s41, 1
          %s200 = smul.addr %s199, 128
          %s201 = scalar_lea.vmem [#allocation3], %s200
          %s202 = smul.u32 16, %s24
          %s204 = ssub.s32 2048, 2048
          %205 = vsyncadd %s198, %s204
          %s206 = smul.addr %s202, 2
          %s207 = sadd.s32 %s25, %s206
          %s208 = smul.addr %s207, 128
          %s209 = scalar_lea.hbm %s0, %s208
          %s210 = sshll.u32 %s201, 4
          %s211 = int_to_ptr.vmem [resolvable:$true] %s210
          %216 = dma.hbm_to_vmem [thread:$0]  %s209, 2048, %s211, %s198, 256, 128, 8
        $region32: #{tpu_custom_call.1} parent=27 // pred_fallthru
          _
      $region28: #{tpu_custom_call.1} parent=5 // pred_fallthru
        _
      %p217 = scmp.le.s32.totalorder 1, %s17
      %p218 = scmp.lt.s32.totalorder %s17, 5
      %p219 = pnand %p217, %p218
      %p220 = pneg %p219
      // Predicated region
      $region33: #{tpu_custom_call.1} parent=5 // pred_check
        _
      $region34: #{tpu_custom_call.1} parent=5 // pred_check_branch
        %222 = sbr.rel (%p219) target = $region36
      $region35: #{tpu_custom_call.1} parent=5 // pred_region
        %s223 = ssub.s32 %s17, 1
        %s224 = sand.u32 %s44, 1
        %s225 = scalar_lea.sflag [#allocation4], %s224
        %s226 = sand.u32 %s44, 1
        %s227 = smul.addr %s226, 128
        %s228 = scalar_lea.vmem [#allocation3], %s227
        // Predicated region
        $region37: #{tpu_custom_call.1} parent=35 // pred_check
          %p229 = pneg %p57
        $region38: #{tpu_custom_call.1} parent=35 // pred_check_branch
          %231 = sbr.rel (%p229) target = $region40
        $region39: #{tpu_custom_call.1} parent=35 // pred_region
          %232 = dma.done %s225, 2048
        $region40: #{tpu_custom_call.1} parent=35 // pred_fallthru
          _
        // Predicated region
        $region41: #{tpu_custom_call.1} parent=35 // pred_check
          %p233 = pneg %p78
        $region42: #{tpu_custom_call.1} parent=35 // pred_check_branch
          %235 = sbr.rel (%p233) target = $region44
        $region43: #{tpu_custom_call.1} parent=35 // pred_region
          %236 = dma.done [#allocation7], 4096
        $region44: #{tpu_custom_call.1} parent=35 // pred_fallthru
          _
        // Predicated region
        $region45: #{tpu_custom_call.1} parent=35 // pred_check
          %p237 = pneg %p99
        $region46: #{tpu_custom_call.1} parent=35 // pred_check_branch
          %239 = sbr.rel (%p237) target = $region48
        $region47: #{tpu_custom_call.1} parent=35 // pred_region
          %240 = dma.done [#allocation7], 2048
        $region48: #{tpu_custom_call.1} parent=35 // pred_fallthru
          _
        %s241 = sand.u32 %s44, 1
        %s242 = scalar_lea.sflag [#allocation4], %s241
        %s243 = sand.u32 %s44, 1
        %s244 = smul.addr %s243, 128
        %s245 = scalar_lea.vmem [#allocation3], %s244
        %p246 = pneg %p57
        %p247 = pneg %p54
        %p248 = pneg %p78
        %p249 = pneg %p75
        %p250 = pneg %p99
        %p251 = pneg %p96
        %p252 = pneg %p120
        %p253 = pneg %p117
        %p254 = pneg %p146
        %p255 = pneg %p143
        %s256 = sand.u32 %s133, 1
        %s257 = scalar_lea.sflag [#allocation5], %s256
        %s258 = sand.u32 %s133, 1
        %s259 = smul.addr %s258, 128
        %s260 = scalar_lea.vmem [#allocation9], %s259
        %s261 = smul.u32 16, %s26
        %s262 = smul.u32 16, %s26
        %p264 = scmp.eq.s32.totalorder %s27, 0
        // Predicated region
        $region49: #{tpu_custom_call.1} parent=35 // pred_check
          %p265 = pneg %p264
        $region50: #{tpu_custom_call.1} parent=35 // pred_check_branch
          %267 = sbr.rel (%p265) target = $region52
        $region51: #{tpu_custom_call.1} parent=35 // pred_region
          %268 = vst [vmem:[#allocation2] sm:$0xff] 0.0
          %269 = vst [vmem:[#allocation2 + $0x8] sm:$0xff] 0.0
          %270 = vst [vmem:[#allocation2 + $0x10] sm:$0xff] 0.0
          %271 = vst [vmem:[#allocation2 + $0x18] sm:$0xff] 0.0
          %272 = vst [vmem:[#allocation2 + $0x20] sm:$0xff] 0.0
          %273 = vst [vmem:[#allocation2 + $0x28] sm:$0xff] 0.0
          %274 = vst [vmem:[#allocation2 + $0x30] sm:$0xff] 0.0
          %275 = vst [vmem:[#allocation2 + $0x38] sm:$0xff] 0.0
          %276 = vst [vmem:[#allocation2 + $0x40] sm:$0xff] 0.0
          %277 = vst [vmem:[#allocation2 + $0x48] sm:$0xff] 0.0
          %278 = vst [vmem:[#allocation2 + $0x50] sm:$0xff] 0.0
          %279 = vst [vmem:[#allocation2 + $0x58] sm:$0xff] 0.0
          %280 = vst [vmem:[#allocation2 + $0x60] sm:$0xff] 0.0
          %281 = vst [vmem:[#allocation2 + $0x68] sm:$0xff] 0.0
          %282 = vst [vmem:[#allocation2 + $0x70] sm:$0xff] 0.0
          %283 = vst [vmem:[#allocation2 + $0x78] sm:$0xff] 0.0
        $region52: #{tpu_custom_call.1} parent=35 // pred_fallthru
          _
        %v284 = vld [vmem:[%s228] sm:$0xff]
        %v285 = vld [vmem:[%s228 + $0x8] sm:$0xff]
        %v286 = vld [vmem:[%s228 + $0x10] sm:$0xff]
        %v287 = vld [vmem:[%s228 + $0x18] sm:$0xff]
        %v288 = vld [vmem:[%s228 + $0x20] sm:$0xff]
        %v289 = vld [vmem:[%s228 + $0x28] sm:$0xff]
        %v290 = vld [vmem:[%s228 + $0x30] sm:$0xff]
        %v291 = vld [vmem:[%s228 + $0x38] sm:$0xff]
        %v292 = vld [vmem:[%s228 + $0x40] sm:$0xff]
        %v293 = vld [vmem:[%s228 + $0x48] sm:$0xff]
        %v294 = vld [vmem:[%s228 + $0x50] sm:$0xff]
        %v295 = vld [vmem:[%s228 + $0x58] sm:$0xff]
        %v296 = vld [vmem:[%s228 + $0x60] sm:$0xff]
        %v297 = vld [vmem:[%s228 + $0x68] sm:$0xff]
        %v298 = vld [vmem:[%s228 + $0x70] sm:$0xff]
        %v299 = vld [vmem:[%s228 + $0x78] sm:$0xff]
        %v300 = vpack.c.bf16 %v285, %v284
        %v301 = vpack.c.bf16 %v287, %v286
        %v302 = vpack.c.bf16 %v289, %v288
        %v303 = vpack.c.bf16 %v291, %v290
        %v304 = vpack.c.bf16 %v293, %v292
        %v305 = vpack.c.bf16 %v295, %v294
        %v306 = vpack.c.bf16 %v297, %v296
        %v307 = vpack.c.bf16 %v299, %v298
        %s308 = smul.u32 %s27, 128
        %s309 = scalar_lea.vmem [#allocation6], %s308
        %v310 = vld [vmem:[%s309] sm:$0xff]
        %v311 = vld [vmem:[%s309 + $0x8] sm:$0xff]
        %v312 = vld [vmem:[%s309 + $0x10] sm:$0xff]
        %v313 = vld [vmem:[%s309 + $0x18] sm:$0xff]
        %v314 = vld [vmem:[%s309 + $0x20] sm:$0xff]
        %v315 = vld [vmem:[%s309 + $0x28] sm:$0xff]
        %v316 = vld [vmem:[%s309 + $0x30] sm:$0xff]
        %v317 = vld [vmem:[%s309 + $0x38] sm:$0xff]
        %v318 = vld [vmem:[%s309 + $0x40] sm:$0xff]
        %v319 = vld [vmem:[%s309 + $0x48] sm:$0xff]
        %v320 = vld [vmem:[%s309 + $0x50] sm:$0xff]
        %v321 = vld [vmem:[%s309 + $0x58] sm:$0xff]
        %v322 = vld [vmem:[%s309 + $0x60] sm:$0xff]
        %v323 = vld [vmem:[%s309 + $0x68] sm:$0xff]
        %v324 = vld [vmem:[%s309 + $0x70] sm:$0xff]
        %v325 = vld [vmem:[%s309 + $0x78] sm:$0xff]
        %v326 = vpack.c.bf16 %v311, %v310
        %v327 = vpack.c.bf16 %v313, %v312
        %v328 = vpack.c.bf16 %v315, %v314
        %v329 = vpack.c.bf16 %v317, %v316
        %v330 = vpack.c.bf16 %v319, %v318
        %v331 = vpack.c.bf16 %v321, %v320
        %v332 = vpack.c.bf16 %v323, %v322
        %v333 = vpack.c.bf16 %v325, %v324
        %v334 = vld [vmem:[#allocation2] sm:$0xff]
        %v335 = vld [vmem:[#allocation2 + $0x8] sm:$0xff]
        %v336 = vld [vmem:[#allocation2 + $0x10] sm:$0xff]
        %v337 = vld [vmem:[#allocation2 + $0x18] sm:$0xff]
        %v338 = vld [vmem:[#allocation2 + $0x20] sm:$0xff]
        %v339 = vld [vmem:[#allocation2 + $0x28] sm:$0xff]
        %v340 = vld [vmem:[#allocation2 + $0x30] sm:$0xff]
        %v341 = vld [vmem:[#allocation2 + $0x38] sm:$0xff]
        %v342 = vld [vmem:[#allocation2 + $0x40] sm:$0xff]
        %v343 = vld [vmem:[#allocation2 + $0x48] sm:$0xff]
        %v344 = vld [vmem:[#allocation2 + $0x50] sm:$0xff]
        %v345 = vld [vmem:[#allocation2 + $0x58] sm:$0xff]
        %v346 = vld [vmem:[#allocation2 + $0x60] sm:$0xff]
        %v347 = vld [vmem:[#allocation2 + $0x68] sm:$0xff]
        %v348 = vld [vmem:[#allocation2 + $0x70] sm:$0xff]
        %v349 = vld [vmem:[#allocation2 + $0x78] sm:$0xff]
        %350 = vmatprep.subr.bf16.mxu0 0
        %351 = vmatpush1.bf16.msra.mxu0 %v333
        %352 = vmatprep.subr.bf16.mxu0 0
        %353 = vmatpush1.bf16.msra.mxu0 %v332
        %354 = vmatprep.subr.bf16.mxu0 0
        %355 = vmatpush1.bf16.msra.mxu0 %v331
        %356 = vmatprep.subr.bf16.mxu0 0
        %357 = vmatpush1.bf16.msra.mxu0 %v330
        %358 = vmatprep.subr.bf16.mxu0 0
        %359 = vmatpush1.bf16.msra.mxu0 %v329
        %360 = vmatprep.subr.bf16.mxu0 0
        %361 = vmatpush1.bf16.msra.mxu0 %v328
        %362 = vmatprep.subr.bf16.mxu0 0
        %363 = vmatpush1.bf16.msra.mxu0 %v327
        %364 = vmatprep.subr.bf16.mxu0 0
        %365 = vmatpush1.bf16.msra.mxu0 %v326
        %366 = vmatprep.subr.bf16.mxu0 0
        %367 = vmatpush2.bf16.msra.mxu0 0
        %368 = vmatprep.subr.bf16.mxu0 0
        %369 = vmatpush2.bf16.msra.mxu0 0
        %370 = vmatprep.subr.bf16.mxu0 0
        %371 = vmatpush2.bf16.msra.mxu0 0
        %372 = vmatprep.subr.bf16.mxu0 0
        %373 = vmatpush2.bf16.msra.mxu0 0
        %374 = vmatprep.subr.bf16.mxu0 0
        %375 = vmatpush2.bf16.msra.mxu0 0
        %376 = vmatprep.subr.bf16.mxu0 0
        %377 = vmatpush2.bf16.msra.mxu0 0
        %378 = vmatprep.subr.bf16.mxu0 0
        %379 = vmatpush2.bf16.msra.mxu0 0
        %380 = vmatprep.subr.bf16.mxu0 0
        %381 = vmatpush2.bf16.msra.mxu0 0
        %382 = vmatprep.mubr.bf16.mxu0 0
        %383 = vmatmul.mubr.bf16.gmra.mxu0 %v300
        %v384 = vpop.f32.mrf.mxu0
        %v385 = vadd.f32 0.0, %v384
        %v386 = vpop.f32.mrf.mxu0
        %v387 = vpop.f32.mrf.mxu0
        %v388 = vadd.f32 0.0, %v387
        %v389 = vpop.f32.mrf.mxu0
        %390 = vmatprep.mubr.bf16.mxu0 0
        %391 = vmatmul.mubr.bf16.gmra.mxu0 %v301
        %v392 = vpop.f32.mrf.mxu0
        %v393 = vadd.f32 0.0, %v392
        %v394 = vpop.f32.mrf.mxu0
        %v395 = vpop.f32.mrf.mxu0
        %v396 = vadd.f32 0.0, %v395
        %v397 = vpop.f32.mrf.mxu0
        %398 = vmatprep.mubr.bf16.mxu0 0
        %399 = vmatmul.mubr.bf16.gmra.mxu0 %v302
        %v400 = vpop.f32.mrf.mxu0
        %v401 = vadd.f32 0.0, %v400
        %v402 = vpop.f32.mrf.mxu0
        %v403 = vpop.f32.mrf.mxu0
        %v404 = vadd.f32 0.0, %v403
        %v405 = vpop.f32.mrf.mxu0
        %406 = vmatprep.mubr.bf16.mxu0 0
        %407 = vmatmul.mubr.bf16.gmra.mxu0 %v303
        %v408 = vpop.f32.mrf.mxu0
        %v409 = vadd.f32 0.0, %v408
        %v410 = vpop.f32.mrf.mxu0
        %v411 = vpop.f32.mrf.mxu0
        %v412 = vadd.f32 0.0, %v411
        %v413 = vpop.f32.mrf.mxu0
        %414 = vmatprep.mubr.bf16.mxu0 0
        %415 = vmatmul.mubr.bf16.gmra.mxu0 %v304
        %v416 = vpop.f32.mrf.mxu0
        %v417 = vadd.f32 0.0, %v416
        %v418 = vpop.f32.mrf.mxu0
        %v419 = vpop.f32.mrf.mxu0
        %v420 = vadd.f32 0.0, %v419
        %v421 = vpop.f32.mrf.mxu0
        %422 = vmatprep.mubr.bf16.mxu0 0
        %423 = vmatmul.mubr.bf16.gmra.mxu0 %v305
        %v424 = vpop.f32.mrf.mxu0
        %v425 = vadd.f32 0.0, %v424
        %v426 = vpop.f32.mrf.mxu0
        %v427 = vpop.f32.mrf.mxu0
        %v428 = vadd.f32 0.0, %v427
        %v429 = vpop.f32.mrf.mxu0
        %430 = vmatprep.mubr.bf16.mxu0 0
        %431 = vmatmul.mubr.bf16.gmra.mxu0 %v306
        %v432 = vpop.f32.mrf.mxu0
        %v433 = vadd.f32 0.0, %v432
        %v434 = vpop.f32.mrf.mxu0
        %v435 = vpop.f32.mrf.mxu0
        %v436 = vadd.f32 0.0, %v435
        %v437 = vpop.f32.mrf.mxu0
        %438 = vmatprep.mubr.bf16.mxu0 0
        %439 = vmatmul.mubr.bf16.gmra.mxu0 %v307
        %v440 = vpop.f32.mrf.mxu0
        %v441 = vadd.f32 0.0, %v440
        %v442 = vpop.f32.mrf.mxu0
        %v443 = vpop.f32.mrf.mxu0
        %v444 = vadd.f32 0.0, %v443
        %v445 = vpop.f32.mrf.mxu0
        %446 = vdwg.mxu0
        %v447 = vadd.f32 %v334, %v385
        %v448 = vadd.f32 %v335, %v388
        %v449 = vadd.f32 %v336, %v393
        %v450 = vadd.f32 %v337, %v396
        %v451 = vadd.f32 %v338, %v401
        %v452 = vadd.f32 %v339, %v404
        %v453 = vadd.f32 %v340, %v409
        %v454 = vadd.f32 %v341, %v412
        %v455 = vadd.f32 %v342, %v417
        %v456 = vadd.f32 %v343, %v420
        %v457 = vadd.f32 %v344, %v425
        %v458 = vadd.f32 %v345, %v428
        %v459 = vadd.f32 %v346, %v433
        %v460 = vadd.f32 %v347, %v436
        %v461 = vadd.f32 %v348, %v441
        %v462 = vadd.f32 %v349, %v444
        %463 = vst [vmem:[#allocation2] sm:$0xff] %v447
        %464 = vst [vmem:[#allocation2 + $0x8] sm:$0xff] %v448
        %465 = vst [vmem:[#allocation2 + $0x10] sm:$0xff] %v449
        %466 = vst [vmem:[#allocation2 + $0x18] sm:$0xff] %v450
        %467 = vst [vmem:[#allocation2 + $0x20] sm:$0xff] %v451
        %468 = vst [vmem:[#allocation2 + $0x28] sm:$0xff] %v452
        %469 = vst [vmem:[#allocation2 + $0x30] sm:$0xff] %v453
        %470 = vst [vmem:[#allocation2 + $0x38] sm:$0xff] %v454
        %471 = vst [vmem:[#allocation2 + $0x40] sm:$0xff] %v455
        %472 = vst [vmem:[#allocation2 + $0x48] sm:$0xff] %v456
        %473 = vst [vmem:[#allocation2 + $0x50] sm:$0xff] %v457
        %474 = vst [vmem:[#allocation2 + $0x58] sm:$0xff] %v458
        %475 = vst [vmem:[#allocation2 + $0x60] sm:$0xff] %v459
        %476 = vst [vmem:[#allocation2 + $0x68] sm:$0xff] %v460
        %477 = vst [vmem:[#allocation2 + $0x70] sm:$0xff] %v461
        %478 = vst [vmem:[#allocation2 + $0x78] sm:$0xff] %v462
        %p479 = scmp.eq.s32.totalorder %s27, 1
        // Predicated region
        $region53: #{tpu_custom_call.1} parent=35 // pred_check
          %p480 = pneg %p479
        $region54: #{tpu_custom_call.1} parent=35 // pred_check_branch
          %482 = sbr.rel (%p480) target = $region56
        $region55: #{tpu_custom_call.1} parent=35 // pred_region
          %v483 = vld [vmem:[#allocation2] sm:$0xff]
          %v484 = vld [vmem:[#allocation2 + $0x8] sm:$0xff]
          %v485 = vld [vmem:[#allocation2 + $0x10] sm:$0xff]
          %v486 = vld [vmem:[#allocation2 + $0x18] sm:$0xff]
          %v487 = vld [vmem:[#allocation2 + $0x20] sm:$0xff]
          %v488 = vld [vmem:[#allocation2 + $0x28] sm:$0xff]
          %v489 = vld [vmem:[#allocation2 + $0x30] sm:$0xff]
          %v490 = vld [vmem:[#allocation2 + $0x38] sm:$0xff]
          %v491 = vld [vmem:[#allocation2 + $0x40] sm:$0xff]
          %v492 = vld [vmem:[#allocation2 + $0x48] sm:$0xff]
          %v493 = vld [vmem:[#allocation2 + $0x50] sm:$0xff]
          %v494 = vld [vmem:[#allocation2 + $0x58] sm:$0xff]
          %v495 = vld [vmem:[#allocation2 + $0x60] sm:$0xff]
          %v496 = vld [vmem:[#allocation2 + $0x68] sm:$0xff]
          %v497 = vld [vmem:[#allocation2 + $0x70] sm:$0xff]
          %v498 = vld [vmem:[#allocation2 + $0x78] sm:$0xff]
          %v499 = vld [vmem:[#allocation8] sm:$0xff]
          %v500 = vld [vmem:[#allocation8 + $0x8] sm:$0xff]
          %v501 = vld [vmem:[#allocation8 + $0x10] sm:$0xff]
          %v502 = vld [vmem:[#allocation8 + $0x18] sm:$0xff]
          %v503 = vld [vmem:[#allocation8 + $0x20] sm:$0xff]
          %v504 = vld [vmem:[#allocation8 + $0x28] sm:$0xff]
          %v505 = vld [vmem:[#allocation8 + $0x30] sm:$0xff]
          %v506 = vld [vmem:[#allocation8 + $0x38] sm:$0xff]
          %v507 = vld [vmem:[#allocation8 + $0x40] sm:$0xff]
          %v508 = vld [vmem:[#allocation8 + $0x48] sm:$0xff]
          %v509 = vld [vmem:[#allocation8 + $0x50] sm:$0xff]
          %v510 = vld [vmem:[#allocation8 + $0x58] sm:$0xff]
          %v511 = vld [vmem:[#allocation8 + $0x60] sm:$0xff]
          %v512 = vld [vmem:[#allocation8 + $0x68] sm:$0xff]
          %v513 = vld [vmem:[#allocation8 + $0x70] sm:$0xff]
          %v514 = vld [vmem:[#allocation8 + $0x78] sm:$0xff]
          %v515 = vld [vmem:[%s3] sm:$0x1]
          %v517 = vlaneseq
          %v518 = vshrl.u32 %v517, 7
          %v519 = vsub.s32 0, %v518
          %v520 = vrot.slane %v515, %v519
          %522 = vmatprep.subr.mxu0 0.0
          %523 = vmatpush1.msra.mxu0 %v514
          %524 = vmatprep.subr.mxu0 0.0
          %525 = vmatpush1.msra.mxu0 %v513
          %526 = vmatprep.subr.mxu0 0.0
          %527 = vmatpush1.msra.mxu0 %v512
          %528 = vmatprep.subr.mxu0 0.0
          %529 = vmatpush1.msra.mxu0 %v511
          %530 = vmatprep.subr.mxu0 0.0
          %531 = vmatpush1.msra.mxu0 %v510
          %532 = vmatprep.subr.mxu0 0.0
          %533 = vmatpush1.msra.mxu0 %v509
          %534 = vmatprep.subr.mxu0 0.0
          %535 = vmatpush1.msra.mxu0 %v508
          %536 = vmatprep.subr.mxu0 0.0
          %537 = vmatpush1.msra.mxu0 %v507
          %538 = vmatprep.subr.mxu0 0.0
          %539 = vmatpush1.msra.mxu0 %v506
          %540 = vmatprep.subr.mxu0 0.0
          %541 = vmatpush1.msra.mxu0 %v505
          %542 = vmatprep.subr.mxu0 0.0
          %543 = vmatpush1.msra.mxu0 %v504
          %544 = vmatprep.subr.mxu0 0.0
          %545 = vmatpush1.msra.mxu0 %v503
          %546 = vmatprep.subr.mxu0 0.0
          %547 = vmatpush1.msra.mxu0 %v502
          %548 = vmatprep.subr.mxu0 0.0
          %549 = vmatpush1.msra.mxu0 %v501
          %550 = vmatprep.subr.mxu0 0.0
          %551 = vmatpush1.msra.mxu0 %v500
          %552 = vmatprep.subr.mxu0 0.0
          %553 = vmatpush1.msra.mxu0 %v499
          %554 = vmatprep.subr.mxu0 0.0
          %555 = vmatpush2.msra.mxu0 0.0
          %556 = vmatprep.subr.mxu0 0.0
          %557 = vmatpush2.msra.mxu0 0.0
          %558 = vmatprep.subr.mxu0 0.0
          %559 = vmatpush2.msra.mxu0 0.0
          %560 = vmatprep.subr.mxu0 0.0
          %561 = vmatpush2.msra.mxu0 0.0
          %562 = vmatprep.subr.mxu0 0.0
          %563 = vmatpush2.msra.mxu0 0.0
          %564 = vmatprep.subr.mxu0 0.0
          %565 = vmatpush2.msra.mxu0 0.0
          %566 = vmatprep.subr.mxu0 0.0
          %567 = vmatpush2.msra.mxu0 0.0
          %568 = vmatprep.subr.mxu0 0.0
          %569 = vmatpush2.msra.mxu0 0.0
          %570 = vmatprep.subr.mxu0 0.0
          %571 = vmatpush2.msra.mxu0 0.0
          %572 = vmatprep.subr.mxu0 0.0
          %573 = vmatpush2.msra.mxu0 0.0
          %574 = vmatprep.subr.mxu0 0.0
          %575 = vmatpush2.msra.mxu0 0.0
          %576 = vmatprep.subr.mxu0 0.0
          %577 = vmatpush2.msra.mxu0 0.0
          %578 = vmatprep.subr.mxu0 0.0
          %579 = vmatpush2.msra.mxu0 0.0
          %580 = vmatprep.subr.mxu0 0.0
          %581 = vmatpush2.msra.mxu0 0.0
          %582 = vmatprep.subr.mxu0 0.0
          %583 = vmatpush2.msra.mxu0 0.0
          %584 = vmatprep.subr.mxu0 0.0
          %585 = vmatpush2.msra.mxu0 0.0
          %586 = vmatprep.mubr.f32.mxu0 0.0
          %587 = vmatmul.mubr.f32.gmra.mxu0 %v483
          %v588 = vpop.f32.mrf.mxu0
          %v589 = vadd.f32 %v520, %v588
          %v590 = vpop.f32.mrf.mxu0
          %591 = vmatprep.mubr.f32.mxu0 0.0
          %592 = vmatmul.mubr.f32.gmra.mxu0 %v484
          %v593 = vpop.f32.mrf.mxu0
          %v594 = vadd.f32 %v520, %v593
          %v595 = vpop.f32.mrf.mxu0
          %596 = vmatprep.mubr.f32.mxu0 0.0
          %597 = vmatmul.mubr.f32.gmra.mxu0 %v485
          %v598 = vpop.f32.mrf.mxu0
          %v599 = vadd.f32 %v520, %v598
          %v600 = vpop.f32.mrf.mxu0
          %601 = vmatprep.mubr.f32.mxu0 0.0
          %602 = vmatmul.mubr.f32.gmra.mxu0 %v486
          %v603 = vpop.f32.mrf.mxu0
          %v604 = vadd.f32 %v520, %v603
          %v605 = vpop.f32.mrf.mxu0
          %606 = vmatprep.mubr.f32.mxu0 0.0
          %607 = vmatmul.mubr.f32.gmra.mxu0 %v487
          %v608 = vpop.f32.mrf.mxu0
          %v609 = vadd.f32 %v520, %v608
          %v610 = vpop.f32.mrf.mxu0
          %611 = vmatprep.mubr.f32.mxu0 0.0
          %612 = vmatmul.mubr.f32.gmra.mxu0 %v488
          %v613 = vpop.f32.mrf.mxu0
          %v614 = vadd.f32 %v520, %v613
          %v615 = vpop.f32.mrf.mxu0
          %616 = vmatprep.mubr.f32.mxu0 0.0
          %617 = vmatmul.mubr.f32.gmra.mxu0 %v489
          %v618 = vpop.f32.mrf.mxu0
          %v619 = vadd.f32 %v520, %v618
          %v620 = vpop.f32.mrf.mxu0
          %621 = vmatprep.mubr.f32.mxu0 0.0
          %622 = vmatmul.mubr.f32.gmra.mxu0 %v490
          %v623 = vpop.f32.mrf.mxu0
          %v624 = vadd.f32 %v520, %v623
          %v625 = vpop.f32.mrf.mxu0
          %626 = vmatprep.mubr.f32.mxu0 0.0
          %627 = vmatmul.mubr.f32.gmra.mxu0 %v491
          %v628 = vpop.f32.mrf.mxu0
          %v629 = vadd.f32 %v520, %v628
          %v630 = vpop.f32.mrf.mxu0
          %631 = vmatprep.mubr.f32.mxu0 0.0
          %632 = vmatmul.mubr.f32.gmra.mxu0 %v492
          %v633 = vpop.f32.mrf.mxu0
          %v634 = vadd.f32 %v520, %v633
          %v635 = vpop.f32.mrf.mxu0
          %636 = vmatprep.mubr.f32.mxu0 0.0
          %637 = vmatmul.mubr.f32.gmra.mxu0 %v493
          %v638 = vpop.f32.mrf.mxu0
          %v639 = vadd.f32 %v520, %v638
          %v640 = vpop.f32.mrf.mxu0
          %641 = vmatprep.mubr.f32.mxu0 0.0
          %642 = vmatmul.mubr.f32.gmra.mxu0 %v494
          %v643 = vpop.f32.mrf.mxu0
          %v644 = vadd.f32 %v520, %v643
          %v645 = vpop.f32.mrf.mxu0
          %646 = vmatprep.mubr.f32.mxu0 0.0
          %647 = vmatmul.mubr.f32.gmra.mxu0 %v495
          %v648 = vpop.f32.mrf.mxu0
          %v649 = vadd.f32 %v520, %v648
          %v650 = vpop.f32.mrf.mxu0
          %651 = vmatprep.mubr.f32.mxu0 0.0
          %652 = vmatmul.mubr.f32.gmra.mxu0 %v496
          %v653 = vpop.f32.mrf.mxu0
          %v654 = vadd.f32 %v520, %v653
          %v655 = vpop.f32.mrf.mxu0
          %656 = vmatprep.mubr.f32.mxu0 0.0
          %657 = vmatmul.mubr.f32.gmra.mxu0 %v497
          %v658 = vpop.f32.mrf.mxu0
          %v659 = vadd.f32 %v520, %v658
          %v660 = vpop.f32.mrf.mxu0
          %661 = vmatprep.mubr.f32.mxu0 0.0
          %662 = vmatmul.mubr.f32.gmra.mxu0 %v498
          %v663 = vpop.f32.mrf.mxu0
          %v664 = vadd.f32 %v520, %v663
          %v665 = vpop.f32.mrf.mxu0
          %666 = vdwg.mxu0
          %667 = vst [vmem:[%s260] sm:$0xff] %v589
          %668 = vst [vmem:[%s260 + $0x8] sm:$0xff] %v594
          %669 = vst [vmem:[%s260 + $0x10] sm:$0xff] %v599
          %670 = vst [vmem:[%s260 + $0x18] sm:$0xff] %v604
          %671 = vst [vmem:[%s260 + $0x20] sm:$0xff] %v609
          %672 = vst [vmem:[%s260 + $0x28] sm:$0xff] %v614
          %673 = vst [vmem:[%s260 + $0x30] sm:$0xff] %v619
          %674 = vst [vmem:[%s260 + $0x38] sm:$0xff] %v624
          %675 = vst [vmem:[%s260 + $0x40] sm:$0xff] %v629
          %676 = vst [vmem:[%s260 + $0x48] sm:$0xff] %v634
          %677 = vst [vmem:[%s260 + $0x50] sm:$0xff] %v639
          %678 = vst [vmem:[%s260 + $0x58] sm:$0xff] %v644
          %679 = vst [vmem:[%s260 + $0x60] sm:$0xff] %v649
          %680 = vst [vmem:[%s260 + $0x68] sm:$0xff] %v654
          %681 = vst [vmem:[%s260 + $0x70] sm:$0xff] %v659
          %682 = vst [vmem:[%s260 + $0x78] sm:$0xff] %v664
        $region56: #{tpu_custom_call.1} parent=35 // pred_fallthru
          _
        %s683 = sand.u32 %s133, 1
        %s684 = scalar_lea.sflag [#allocation5], %s683
        %s685 = sand.u32 %s133, 1
        %s686 = smul.addr %s685, 128
        %s687 = scalar_lea.vmem [#allocation9], %s686
        // Predicated region
        $region57: #{tpu_custom_call.1} parent=35 // pred_check
          %p688 = pneg %p143
        $region58: #{tpu_custom_call.1} parent=35 // pred_check_branch
          %690 = sbr.rel (%p688) target = $region60
        $region59: #{tpu_custom_call.1} parent=35 // pred_region
          %s691 = smul.u32 16, %s26
          %s693 = ssub.s32 2048, 2048
          %694 = vsyncadd %s684, %s693
          %s695 = smul.addr %s691, 128
          %s696 = scalar_lea.hbm %s4, %s695
          %s697 = sshll.u32 %s687, 4
          %s698 = int_to_ptr.vmem [resolvable:$true] %s697
          %703 = dma.vmem_to_hbm [thread:$0]  %s698, 2048, %s696, %s684, 128, 128, 8
        $region60: #{tpu_custom_call.1} parent=35 // pred_fallthru
          _
      $region36: #{tpu_custom_call.1} parent=5 // pred_fallthru
        _
      %p704 = scmp.le.s32.totalorder 2, %s17
      // Predicated region
      $region61: #{tpu_custom_call.1} parent=5 // pred_check
        %p705 = pneg %p704
      $region62: #{tpu_custom_call.1} parent=5 // pred_check_branch
        %707 = sbr.rel (%p705) target = $region64
      $region63: #{tpu_custom_call.1} parent=5 // pred_region
        %s708 = ssub.s32 %s17, 2
        // Predicated region
        $region65: #{tpu_custom_call.1} parent=63 // pred_check
          %p709 = pneg %p149
        $region66: #{tpu_custom_call.1} parent=63 // pred_check_branch
          %711 = sbr.rel (%p709) target = $region68
        $region67: #{tpu_custom_call.1} parent=63 // pred_region
          %s712 = sand.u32 %s134, 1
          %s713 = scalar_lea.sflag [#allocation5], %s712
          %s714 = sand.u32 %s134, 1
          %s715 = smul.addr %s714, 128
          %s716 = scalar_lea.vmem [#allocation9], %s715
          %717 = dma.done %s713, 2048
        $region68: #{tpu_custom_call.1} parent=63 // pred_fallthru
          _
      $region64: #{tpu_custom_call.1} parent=5 // pred_fallthru
        _
    $region6: #{tpu_custom_call.1} parent=1 // loop_footer
      %s21 = sadd.s32 1, %s17
    $region7: #{tpu_custom_call.1} parent=1 // loop_footer_branch
      %16 = sbr.rel target = $region3
    $region8: #{tpu_custom_call.1} parent=1 // loop_exit
      _
    %718 = vsyncpa [#allocation4], 1
    %s719 = scalar_lea.sflag [#allocation4], 1
    %720 = vsyncpa %s719, 1
    %721 = vsyncpa [#allocation7], 1
    %722 = vsyncpa [#allocation5], 1
    %s723 = scalar_lea.sflag [#allocation5], 1
    %724 = vsyncpa %s723, 1

</llo_original>
